<compile_context>
chip_gen: v7x
topology: tpu7x:2x2x1
jax: 0.10.0
libtpu: 0.0.40
codegen_flags: <defaults>
</compile_context>

<pallas_src>
import jax
import jax.numpy as jnp
import numpy as np
from jax.experimental import pallas as pl
from jax.experimental.pallas import tpu as pltpu


def cnn_kernel(xf_ref, d_ref, wtoe_ref, bconv_ref, w1c_ref, w1d_ref,
               b1_ref, w2_ref, b2_ref, o_ref):
    # xf_ref:    (B, C*L)          flattened input signal
    # d_ref:     (B, Dd)           auxiliary dense input
    # wtoe_ref:  (C*L, Lout*F)     Toeplitz-expanded Conv1d weight
    # bconv_ref: (1, Lout*F)       conv bias tiled to flatten layout
    # w1c_ref:   (Lout*F, N)       dense1 weight (conv part, column-permuted)
    # w1d_ref:   (Dd, N)           dense1 weight (d_input part)
    # b1_ref:    (1, N)
    # w2_ref:    (N, 1)
    # b2_ref:    (1, 1)
    # o_ref:     (B, 1)

    # Conv1d for all batch rows in one MXU matmul; bias folded in with a single add.
    conv = jnp.dot(xf_ref[...], wtoe_ref[...],
                   preferred_element_type=jnp.float32) + bconv_ref[...]   # (B, Lout*F)

    # dense1 on [conv_flat, d_input] as two batched matmuls (column split of W1).
    h = (jnp.dot(conv, w1c_ref[...], preferred_element_type=jnp.float32)
         + jnp.dot(d_ref[...], w1d_ref[...], preferred_element_type=jnp.float32)
         + b1_ref[...])                                                   # (B, N)
    h = jnp.maximum(h, 0.0)                                               # ReLU

    # Output layer + single full store.
    o_ref[...] = jnp.dot(h, w2_ref[...],
                         preferred_element_type=jnp.float32) + b2_ref[...]


@jax.jit
def cnn_forward(x, d, params):
    """Pallas implementation of CNNModel.forward. Returns shape (B,)."""
    if d.ndim == 1:
        d = d[:, None]
    wconv, bconv, w1, b1, w2, b2 = params
    F, C, K = wconv.shape
    B, _, L = x.shape
    Lout = L - K + 1
    N = w1.shape[0]

    # ---- glue: pure input/weight re-layout (no arithmetic on data) ----
    x_flat = x.reshape(B, C * L)

    # Toeplitz expansion of the conv weight:
    #   Wtoe[c*L + l, t*F + f] = wconv[f, c, l - t]  if 0 <= l - t < K else 0
    # so that (x_flat @ Wtoe)[b, t*F + f] = sum_{c,k} x[b, c, t+k] * wconv[f, c, k].
    t_idx = jnp.arange(Lout)[:, None]
    l_idx = jnp.arange(L)[None, :]
    k_off = l_idx - t_idx                                        # (Lout, L)
    valid = (k_off >= 0) & (k_off < K)
    w_g = wconv[:, :, jnp.clip(k_off, 0, K - 1)]                 # (F, C, Lout, L)
    w_g = jnp.where(valid[None, None], w_g, 0.0)
    wtoe = jnp.transpose(w_g, (1, 3, 2, 0)).reshape(C * L, Lout * F)

    bconv_t = jnp.tile(bconv, Lout).reshape(1, Lout * F)         # bias at t*F + f

    # W1 columns: PyTorch flatten order is f*Lout + t; kernel produces t*F + f.
    w1c = jnp.transpose(w1[:, :F * Lout].reshape(N, F, Lout),
                        (2, 1, 0)).reshape(Lout * F, N)          # (Lout*F, N)
    w1d = jnp.transpose(w1[:, F * Lout:], (1, 0))                # (Dd, N)
    b1_r = b1.reshape(1, N)
    w2_t = jnp.transpose(w2, (1, 0))                             # (N, 1)
    b2_r = b2.reshape(1, 1)

    vmem = pl.BlockSpec(memory_space=pltpu.MemorySpace.VMEM)
    out = pl.pallas_call(
        cnn_kernel,
        out_shape=jax.ShapeDtypeStruct((B, 1), jnp.float32),
        in_specs=[vmem] * 9,
        out_specs=vmem,
    )(x_flat, d, wtoe, bconv_t, w1c, w1d, b1_r, w2_t, b2_r)
    return out[:, 0]                                             # squeeze(-1)


def ref_forward(x, d, params):
    """Pure-JAX reference matching the PyTorch forward exactly."""
    wconv, bconv, w1, b1, w2, b2 = params
    if d.ndim == 1:
        d = d[:, None]
    K = wconv.shape[2]
    L = x.shape[2]
    Lout = L - K + 1
    conv = sum(jnp.einsum('bcl,fc->bfl', x[:, :, k:k + Lout], wconv[:, :, k])
               for k in range(K)) + bconv[None, :, None]
    flat = conv.reshape(x.shape[0], -1)
    cat = jnp.concatenate([flat, d], axis=1)
    h = jnp.maximum(cat @ w1.T + b1, 0.0)
    return (h @ w2.T + b2)[:, 0]


if __name__ == "__main__":
    # Module hyper-parameters (small, consistent with the forward pass).
    B = 2                 # batch
    C_in, L = 4, 16       # X_input_shape = (4, 16)
    Dd = 6                # d_input_shape = (6,)
    K = 3                 # kernel_size
    F = 8                 # num_filters
    N = 32                # num_dense
    Lout = L - K + 1
    flat_dim = F * Lout + Dd

    # Deterministic parameter init (synthetic; shapes mirror nn.Module __init__).
    pk = jax.random.PRNGKey(42)
    k1, k2, k3, k4, k5, k6 = jax.random.split(pk, 6)
    wconv = 0.1 * jax.random.normal(k1, (F, C_in, K), jnp.float32)   # Conv1d weight
    bconv = 0.1 * jax.random.normal(k2, (F,), jnp.float32)           # Conv1d bias
    w1 = 0.1 * jax.random.normal(k3, (N, flat_dim), jnp.float32)     # stack Linear 1
    b1 = 0.1 * jax.random.normal(k4, (N,), jnp.float32)
    w2 = 0.1 * jax.random.normal(k5, (1, N), jnp.float32)            # stack Linear 2
    b2 = 0.1 * jax.random.normal(k6, (1,), jnp.float32)
    params = (wconv, bconv, w1, b1, w2, b2)

    # Deterministic inputs.
    ik = jax.random.PRNGKey(0)
    ik1, ik2 = jax.random.split(ik)
    x_input = jax.random.normal(ik1, (B, C_in, L), jnp.float32)
    d_input = jax.random.normal(ik2, (B, Dd), jnp.float32)

    out = jax.block_until_ready(cnn_forward(x_input, d_input, params))
    ref = jax.block_until_ready(ref_forward(x_input, d_input, params))

    assert out.shape == (B,)
    np.testing.assert_allclose(np.asarray(out), np.asarray(ref),
                               rtol=1e-4, atol=1e-4)
    print("KERNEL_OK")
</pallas_src>

<mosaic_0001>
module attributes {stable_mosaic.version = 11 : i64} {
  func.func @cnn_kernel(%arg0: memref<2x64xf32, #tpu.memory_space<vmem>>, %arg1: memref<2x6xf32, #tpu.memory_space<vmem>>, %arg2: memref<64x112xf32, #tpu.memory_space<vmem>>, %arg3: memref<1x112xf32, #tpu.memory_space<vmem>>, %arg4: memref<112x32xf32, #tpu.memory_space<vmem>>, %arg5: memref<6x32xf32, #tpu.memory_space<vmem>>, %arg6: memref<1x32xf32, #tpu.memory_space<vmem>>, %arg7: memref<32x1xf32, #tpu.memory_space<vmem>>, %arg8: memref<1x1xf32, #tpu.memory_space<vmem>>, %arg9: memref<2x1xf32, #tpu.memory_space<vmem>>) attributes {dimension_semantics = [], scalar_prefetch = 0 : i64, scratch_operands = 0 : i64, tpu.core_type = #tpu.core_type<tc>} {
    %c0 = arith.constant 0 : index
    %c0_0 = arith.constant 0 : index
    %0 = vector.load %arg0[%c0, %c0_0] : memref<2x64xf32, #tpu.memory_space<vmem>>, vector<2x64xf32>
    %c0_1 = arith.constant 0 : index
    %c0_2 = arith.constant 0 : index
    %1 = vector.load %arg2[%c0_1, %c0_2] : memref<64x112xf32, #tpu.memory_space<vmem>>, vector<64x112xf32>
    %cst = arith.constant dense<0.000000e+00> : vector<2x112xf32>
    %2 = tpu.matmul %0, %1, %cst {dimension_numbers = #tpu.dot_dimension_numbers<[1], [0], [0], [1], [0, 0, 1, 1], [], []>} : vector<2x64xf32>, vector<64x112xf32>, vector<2x112xf32> -> vector<2x112xf32>
    %c0_3 = arith.constant 0 : index
    %c0_4 = arith.constant 0 : index
    %3 = vector.load %arg3[%c0_3, %c0_4] : memref<1x112xf32, #tpu.memory_space<vmem>>, vector<1x112xf32>
    %4 = vector.broadcast %3 : vector<1x112xf32> to vector<2x112xf32>
    %5 = arith.addf %2, %4 : vector<2x112xf32>
    %c0_5 = arith.constant 0 : index
    %c0_6 = arith.constant 0 : index
    %6 = vector.load %arg4[%c0_5, %c0_6] : memref<112x32xf32, #tpu.memory_space<vmem>>, vector<112x32xf32>
    %cst_7 = arith.constant dense<0.000000e+00> : vector<2x32xf32>
    %7 = tpu.matmul %5, %6, %cst_7 {dimension_numbers = #tpu.dot_dimension_numbers<[1], [0], [0], [1], [0, 0, 1, 1], [], []>} : vector<2x112xf32>, vector<112x32xf32>, vector<2x32xf32> -> vector<2x32xf32>
    %c0_8 = arith.constant 0 : index
    %c0_9 = arith.constant 0 : index
    %8 = vector.load %arg1[%c0_8, %c0_9] : memref<2x6xf32, #tpu.memory_space<vmem>>, vector<2x6xf32>
    %c0_10 = arith.constant 0 : index
    %c0_11 = arith.constant 0 : index
    %9 = vector.load %arg5[%c0_10, %c0_11] : memref<6x32xf32, #tpu.memory_space<vmem>>, vector<6x32xf32>
    %cst_12 = arith.constant dense<0.000000e+00> : vector<2x32xf32>
    %10 = tpu.matmul %8, %9, %cst_12 {dimension_numbers = #tpu.dot_dimension_numbers<[1], [0], [0], [1], [0, 0, 1, 1], [], []>} : vector<2x6xf32>, vector<6x32xf32>, vector<2x32xf32> -> vector<2x32xf32>
    %11 = arith.addf %7, %10 : vector<2x32xf32>
    %c0_13 = arith.constant 0 : index
    %c0_14 = arith.constant 0 : index
    %12 = vector.load %arg6[%c0_13, %c0_14] : memref<1x32xf32, #tpu.memory_space<vmem>>, vector<1x32xf32>
    %13 = vector.broadcast %12 : vector<1x32xf32> to vector<2x32xf32>
    %14 = arith.addf %11, %13 : vector<2x32xf32>
    %cst_15 = arith.constant 0.000000e+00 : f32
    %15 = vector.broadcast %cst_15 : f32 to vector<2x32xf32>
    %16 = arith.maximumf %14, %15 : vector<2x32xf32>
    %c0_16 = arith.constant 0 : index
    %c0_17 = arith.constant 0 : index
    %17 = vector.load %arg7[%c0_16, %c0_17] : memref<32x1xf32, #tpu.memory_space<vmem>>, vector<32x1xf32>
    %cst_18 = arith.constant dense<0.000000e+00> : vector<2x1xf32>
    %18 = tpu.matmul %16, %17, %cst_18 {dimension_numbers = #tpu.dot_dimension_numbers<[1], [0], [0], [1], [0, 0, 1, 1], [], []>} : vector<2x32xf32>, vector<32x1xf32>, vector<2x1xf32> -> vector<2x1xf32>
    %c0_19 = arith.constant 0 : index
    %c0_20 = arith.constant 0 : index
    %19 = vector.load %arg8[%c0_19, %c0_20] : memref<1x1xf32, #tpu.memory_space<vmem>>, vector<1x1xf32>
    %20 = vector.broadcast %19 : vector<1x1xf32> to vector<2x1xf32>
    %21 = arith.addf %18, %20 : vector<2x1xf32>
    %c0_21 = arith.constant 0 : index
    %c0_22 = arith.constant 0 : index
    %22 = vector.load %arg9[%c0_21, %c0_22] : memref<2x1xf32, #tpu.memory_space<vmem>>, vector<2x1xf32>
    tpu.vector_store %arg9[%c0_21, %c0_22], %21 {strides = array<i32>} : memref<2x1xf32, #tpu.memory_space<vmem>>, vector<2x1xf32>,
    return
  }
}

</mosaic_0001>

<llo_original>
// kernel: tile.8
$region0: #{tile.8}
  #allocation0 [shape = 's32[1]{0}', space=sflag, size = 0x4, scoped, tag = 'scoped memory for tile.8']
  %s0 = inlined_call_operand.vmem [shape: f32[8], index: 0, kind: input, shape index: {}]
  %s1 = inlined_call_operand.vmem [shape: f32[14,8], index: 1, kind: output, shape index: {}]
  // Predicated region
  $region2: #{tile.8} parent=0 // pred_check
    _
  $region3: #{tile.8} parent=0 // pred_check_branch
    %3 = sbr.rel (0) target = $region5
  $region4: #{tile.8} parent=0 // pred_region
    _
  $region5: #{tile.8} parent=0 // pred_fallthru
    _
  %v4 = vld [vmem:[%s0] ss:$0 sm:$0xff]
  %5 = vst [vmem:[%s1] sm:$0xff] %v4
  %s6 = scalar_lea.vmem %s1, 8
  %7 = vst [vmem:[%s6] sm:$0xff] %v4

// kernel: tile.9
$region0: #{tile.9}
  %s0 = inlined_call_operand.vmem [shape: f32[14,8], index: 0, kind: input, shape index: {}]
  %s1 = inlined_call_operand.vmem [shape: f32[1,112], index: 1, kind: output, shape index: {}]
  $region1: #{tile.9} parent=0
    #allocation0 [shape = 'u8[4096]{0}', space=vmem, size = 0x1000, scoped, tag = 'scoped mem for output reshape']
    %v2 = vld [vmem:[%s0] sm:$0x1]
    %vm3 = vcmask 64512
    %4 = vst.msk [vmem:[#allocation0] sm:$0x1] %vm3, %v2
    %s5 = scalar_lea.vmem %s0, 13
    %v6 = vld [vmem:[%s5] sm:$0x1]
    %7 = vrot.lane.b32.xlu0 %v6, 104
    %v8 = vpop.permute.xlu0 %7
    %vm9 = vcmask 917312
    %10 = vst.msk [vmem:[#allocation0] sm:$0x1] %vm9, %v8
    %s11 = scalar_lea.vmem %s0, 12
    %v12 = vld [vmem:[%s11] sm:$0x1]
    %13 = vrot.lane.b32.xlu0 %v12, 96
    %v14 = vpop.permute.xlu0 %13
    %vm15 = vcmask 851712
    %16 = vst.msk [vmem:[#allocation0] sm:$0x1] %vm15, %v14
    %s17 = scalar_lea.vmem %s0, 11
    %v18 = vld [vmem:[%s17] sm:$0x1]
    %19 = vrot.lane.b32.xlu0 %v18, 88
    %v20 = vpop.permute.xlu0 %19
    %vm21 = vcmask 786112
    %22 = vst.msk [vmem:[#allocation0] sm:$0x1] %vm21, %v20
    %s23 = scalar_lea.vmem %s0, 10
    %v24 = vld [vmem:[%s23] sm:$0x1]
    %25 = vrot.lane.b32.xlu0 %v24, 80
    %v26 = vpop.permute.xlu0 %25
    %vm27 = vcmask 720512
    %28 = vst.msk [vmem:[#allocation0] sm:$0x1] %vm27, %v26
    %s29 = scalar_lea.vmem %s0, 9
    %v30 = vld [vmem:[%s29] sm:$0x1]
    %31 = vrot.lane.b32.xlu0 %v30, 72
    %v32 = vpop.permute.xlu0 %31
    %vm33 = vcmask 654912
    %34 = vst.msk [vmem:[#allocation0] sm:$0x1] %vm33, %v32
    %s35 = scalar_lea.vmem %s0, 8
    %v36 = vld [vmem:[%s35] sm:$0x1]
    %37 = vrot.lane.b32.xlu0 %v36, 64
    %v38 = vpop.permute.xlu0 %37
    %vm39 = vcmask 589312
    %40 = vst.msk [vmem:[#allocation0] sm:$0x1] %vm39, %v38
    %s41 = scalar_lea.vmem %s0, 7
    %v42 = vld [vmem:[%s41] sm:$0x1]
    %43 = vrot.lane.b32.xlu0 %v42, 56
    %v44 = vpop.permute.xlu0 %43
    %vm45 = vcmask 523712
    %46 = vst.msk [vmem:[#allocation0] sm:$0x1] %vm45, %v44
    %s47 = scalar_lea.vmem %s0, 6
    %v48 = vld [vmem:[%s47] sm:$0x1]
    %49 = vrot.lane.b32.xlu0 %v48, 48
    %v50 = vpop.permute.xlu0 %49
    %vm51 = vcmask 458112
    %52 = vst.msk [vmem:[#allocation0] sm:$0x1] %vm51, %v50
    %s53 = scalar_lea.vmem %s0, 5
    %v54 = vld [vmem:[%s53] sm:$0x1]
    %55 = vrot.lane.b32.xlu0 %v54, 40
    %v56 = vpop.permute.xlu0 %55
    %vm57 = vcmask 392512
    %58 = vst.msk [vmem:[#allocation0] sm:$0x1] %vm57, %v56
    %s59 = scalar_lea.vmem %s0, 4
    %v60 = vld [vmem:[%s59] sm:$0x1]
    %61 = vrot.lane.b32.xlu0 %v60, 32
    %v62 = vpop.permute.xlu0 %61
    %vm63 = vcmask 326912
    %64 = vst.msk [vmem:[#allocation0] sm:$0x1] %vm63, %v62
    %s65 = scalar_lea.vmem %s0, 3
    %v66 = vld [vmem:[%s65] sm:$0x1]
    %67 = vrot.lane.b32.xlu0 %v66, 24
    %v68 = vpop.permute.xlu0 %67
    %vm69 = vcmask 261312
    %70 = vst.msk [vmem:[#allocation0] sm:$0x1] %vm69, %v68
    %s71 = scalar_lea.vmem %s0, 2
    %v72 = vld [vmem:[%s71] sm:$0x1]
    %73 = vrot.lane.b32.xlu0 %v72, 16
    %v74 = vpop.permute.xlu0 %73
    %vm75 = vcmask 195712
    %76 = vst.msk [vmem:[#allocation0] sm:$0x1] %vm75, %v74
    %s77 = scalar_lea.vmem %s0, 1
    %v78 = vld [vmem:[%s77] sm:$0x1]
    %79 = vrot.lane.b32.xlu0 %v78, 8
    %v80 = vpop.permute.xlu0 %79
    %vm81 = vcmask 130112
    %82 = vst.msk [vmem:[#allocation0] sm:$0x1] %vm81, %v80
    %s84 = sshllo.u32 0, 1
    %v86 = vld [vmem:[#allocation0] sm:%s84]
    %s87 = sshllo.u32 0, 1
    %88 = vst [vmem:[%s1] sm:%s87] %v86

// kernel: cnn_forward.1
$region0: #{cnn_forward.1}
  #allocation0 [shape = 'u32[]', space=smem, size = 0x4, offset = 0x4, fixed_abs, tag = 'smem constant byte address 0x4 - core index']
  #allocation1 [shape = 'u32[144,128]{1,0:T(1,128)}', space=vmem, size = 0x12000, scoped, tag = 'internal scratch']
  #allocation2 [shape = 'f32[1,1]{1,0:T(1,128)S(1)}', space=vmem, size = 0x200, scoped, tag = 'scoped memory for cnn_forward.1']
  %s0 = inlined_call_operand.vmem [shape: f32[2,64], index: 0, kind: input, shape index: {}]
  %s1 = inlined_call_operand.vmem [shape: f32[2,6], index: 1, kind: input, shape index: {}]
  %s2 = inlined_call_operand.vmem [shape: f32[64,112], index: 2, kind: input, shape index: {}]
  %s3 = inlined_call_operand.vmem [shape: f32[1,112], index: 3, kind: input, shape index: {}]
  %s4 = inlined_call_operand.vmem [shape: f32[112,32], index: 4, kind: input, shape index: {}]
  %s5 = inlined_call_operand.vmem [shape: f32[6,32], index: 5, kind: input, shape index: {}]
  %s6 = inlined_call_operand.vmem [shape: f32[1,32], index: 6, kind: input, shape index: {}]
  %s7 = inlined_call_operand.vmem [shape: f32[32,1], index: 7, kind: input, shape index: {}]
  %s8 = inlined_call_operand.<no memory space> [shape: f32[1,1], index: 8, kind: input, shape index: {}]
  %s9 = inlined_call_operand.vmem [shape: f32[2,1], index: 9, kind: output, shape index: {}]
  %s10 = sld [smem:[#allocation0]]
  $region46: #{cnn_forward.1} parent=0
    _
  %s12 = ssub.s32 1, %s10
  %s13 = scalar_select 0, %s12, %s10
  %v14 = vstv %s8
  %15 = vst [vmem:[#allocation2] sm:$0x1] %v14
  // Predicated region
  $region2: #{cnn_forward.1} parent=0 // pred_check
    _
  $region3: #{cnn_forward.1} parent=0 // pred_check_branch
    %17 = sbr.rel (0) target = $region5
  $region4: #{cnn_forward.1} parent=0 // pred_region
    _
  $region5: #{cnn_forward.1} parent=0 // pred_fallthru
    _
  // Predicated region
  $region6: #{cnn_forward.1} parent=0 // pred_check
    _
  $region7: #{cnn_forward.1} parent=0 // pred_check_branch
    %19 = sbr.rel (0) target = $region9
  $region8: #{cnn_forward.1} parent=0 // pred_region
    _
  $region9: #{cnn_forward.1} parent=0 // pred_fallthru
    _
  // Predicated region
  $region10: #{cnn_forward.1} parent=0 // pred_check
    _
  $region11: #{cnn_forward.1} parent=0 // pred_check_branch
    %21 = sbr.rel (0) target = $region13
  $region12: #{cnn_forward.1} parent=0 // pred_region
    _
  $region13: #{cnn_forward.1} parent=0 // pred_fallthru
    _
  // Predicated region
  $region14: #{cnn_forward.1} parent=0 // pred_check
    _
  $region15: #{cnn_forward.1} parent=0 // pred_check_branch
    %23 = sbr.rel (0) target = $region17
  $region16: #{cnn_forward.1} parent=0 // pred_region
    _
  $region17: #{cnn_forward.1} parent=0 // pred_fallthru
    _
  // Predicated region
  $region18: #{cnn_forward.1} parent=0 // pred_check
    _
  $region19: #{cnn_forward.1} parent=0 // pred_check_branch
    %25 = sbr.rel (0) target = $region21
  $region20: #{cnn_forward.1} parent=0 // pred_region
    _
  $region21: #{cnn_forward.1} parent=0 // pred_fallthru
    _
  // Predicated region
  $region22: #{cnn_forward.1} parent=0 // pred_check
    _
  $region23: #{cnn_forward.1} parent=0 // pred_check_branch
    %27 = sbr.rel (0) target = $region25
  $region24: #{cnn_forward.1} parent=0 // pred_region
    _
  $region25: #{cnn_forward.1} parent=0 // pred_fallthru
    _
  // Predicated region
  $region26: #{cnn_forward.1} parent=0 // pred_check
    _
  $region27: #{cnn_forward.1} parent=0 // pred_check_branch
    %29 = sbr.rel (0) target = $region29
  $region28: #{cnn_forward.1} parent=0 // pred_region
    _
  $region29: #{cnn_forward.1} parent=0 // pred_fallthru
    _
  // Predicated region
  $region30: #{cnn_forward.1} parent=0 // pred_check
    _
  $region31: #{cnn_forward.1} parent=0 // pred_check_branch
    %31 = sbr.rel (0) target = $region33
  $region32: #{cnn_forward.1} parent=0 // pred_region
    _
  $region33: #{cnn_forward.1} parent=0 // pred_fallthru
    _
  // Predicated region
  $region34: #{cnn_forward.1} parent=0 // pred_check
    _
  $region35: #{cnn_forward.1} parent=0 // pred_check_branch
    %33 = sbr.rel (0) target = $region37
  $region36: #{cnn_forward.1} parent=0 // pred_region
    _
  $region37: #{cnn_forward.1} parent=0 // pred_fallthru
    _
  %v34 = vld [vmem:[%s0] sm:$0x3]
  %v35 = vld [vmem:[%s2] sm:$0xff]
  %v36 = vld [vmem:[%s2 + $0x8] sm:$0xff]
  %v37 = vld [vmem:[%s2 + $0x10] sm:$0xff]
  %v38 = vld [vmem:[%s2 + $0x18] sm:$0xff]
  %v39 = vld [vmem:[%s2 + $0x20] sm:$0xff]
  %v40 = vld [vmem:[%s2 + $0x28] sm:$0xff]
  %v41 = vld [vmem:[%s2 + $0x30] sm:$0xff]
  %v42 = vld [vmem:[%s2 + $0x38] sm:$0xff]
  %v43 = vld [vmem:[%s3] sm:$0x1]
  %v45 = vlaneseq
  %v46 = vshrl.u32 %v45, 7
  %v47 = vsub.s32 0, %v46
  %v48 = vrot.slane %v43, %v47
  %vm50 = vcmask 523264
  %v52 = vsel %vm50, %v34, 0
  %54 = vmatprep.subr.mxu0 0.0
  %55 = vmatpush1.msra.mxu0 %v35
  %56 = vmatprep.subr.mxu0 0.0
  %57 = vmatpush1.msra.mxu0 %v36
  %58 = vmatprep.subr.mxu0 0.0
  %59 = vmatpush1.msra.mxu0 %v37
  %60 = vmatprep.subr.mxu0 0.0
  %61 = vmatpush1.msra.mxu0 %v38
  %62 = vmatprep.subr.mxu0 0.0
  %63 = vmatpush1.msra.mxu0 %v39
  %64 = vmatprep.subr.mxu0 0.0
  %65 = vmatpush1.msra.mxu0 %v40
  %66 = vmatprep.subr.mxu0 0.0
  %67 = vmatpush1.msra.mxu0 %v41
  %68 = vmatprep.subr.mxu0 0.0
  %69 = vmatpush1.msra.mxu0 %v42
  %70 = vmatprep.subr.mxu0 0.0
  %71 = vmatpush1.msra.mxu0 0.0
  %72 = vmatprep.subr.mxu0 0.0
  %73 = vmatpush1.msra.mxu0 0.0
  %74 = vmatprep.subr.mxu0 0.0
  %75 = vmatpush1.msra.mxu0 0.0
  %76 = vmatprep.subr.mxu0 0.0
  %77 = vmatpush1.msra.mxu0 0.0
  %78 = vmatprep.subr.mxu0 0.0
  %79 = vmatpush1.msra.mxu0 0.0
  %80 = vmatprep.subr.mxu0 0.0
  %81 = vmatpush1.msra.mxu0 0.0
  %82 = vmatprep.subr.mxu0 0.0
  %83 = vmatpush1.msra.mxu0 0.0
  %84 = vmatprep.subr.mxu0 0.0
  %85 = vmatpush1.msra.mxu0 0.0
  %86 = vmatprep.subr.mxu0 0.0
  %87 = vmatpush1.msra.mxu0 0.0
  %88 = vmatprep.subr.mxu0 0.0
  %89 = vmatpush1.msra.mxu0 0.0
  %90 = vmatprep.subr.mxu0 0.0
  %91 = vmatpush1.msra.mxu0 0.0
  %92 = vmatprep.subr.mxu0 0.0
  %93 = vmatpush1.msra.mxu0 0.0
  %94 = vmatprep.subr.mxu0 0.0
  %95 = vmatpush1.msra.mxu0 0.0
  %96 = vmatprep.subr.mxu0 0.0
  %97 = vmatpush1.msra.mxu0 0.0
  %98 = vmatprep.subr.mxu0 0.0
  %99 = vmatpush1.msra.mxu0 0.0
  %100 = vmatprep.subr.mxu0 0.0
  %101 = vmatpush1.msra.mxu0 0.0
  %102 = vmatprep.subr.mxu0 0.0
  %103 = vmatpush1.msra.mxu0 0.0
  %104 = vmatprep.subr.mxu0 0.0
  %105 = vmatpush1.msra.mxu0 0.0
  %106 = vmatprep.subr.mxu0 0.0
  %107 = vmatpush1.msra.mxu0 0.0
  %108 = vmatprep.subr.mxu0 0.0
  %109 = vmatpush1.msra.mxu0 0.0
  %110 = vmatprep.subr.mxu0 0.0
  %111 = vmatpush1.msra.mxu0 0.0
  %112 = vmatprep.subr.mxu0 0.0
  %113 = vmatpush1.msra.mxu0 0.0
  %114 = vmatprep.subr.mxu0 0.0
  %115 = vmatpush1.msra.mxu0 0.0
  %116 = vmatprep.subr.mxu0 0.0
  %117 = vmatpush1.msra.mxu0 0.0
  %118 = vmatprep.mubr.f32.mxu0 0.0
  %119 = vmatmul.mubr.f32.gmra.mrb[0].mxu0 %v52
  %v120 = vpop.f32.mrb[0].mxu0
  %v121 = vadd.f32 %v48, %v120
  %v122 = vpop.f32.mrb[0].mxu0
  %123 = vdwg.mxu0
  %v124 = vld [vmem:[%s4] sm:$0xff]
  %v125 = vld [vmem:[%s4 + $0x8] sm:$0xff]
  %v126 = vld [vmem:[%s4 + $0x10] sm:$0xff]
  %v127 = vld [vmem:[%s4 + $0x18] sm:$0xff]
  %v128 = vld [vmem:[%s4 + $0x20] sm:$0xff]
  %v129 = vld [vmem:[%s4 + $0x28] sm:$0xff]
  %v130 = vld [vmem:[%s4 + $0x30] sm:$0xff]
  %v131 = vld [vmem:[%s4 + $0x38] sm:$0xff]
  %v132 = vld [vmem:[%s4 + $0x40] sm:$0xff]
  %v133 = vld [vmem:[%s4 + $0x48] sm:$0xff]
  %v134 = vld [vmem:[%s4 + $0x50] sm:$0xff]
  %v135 = vld [vmem:[%s4 + $0x58] sm:$0xff]
  %v136 = vld [vmem:[%s4 + $0x60] sm:$0xff]
  %v137 = vld [vmem:[%s4 + $0x68] sm:$0xff]
  %v138 = vld [vmem:[%s1] sm:$0x3]
  %v139 = vld [vmem:[%s5] sm:$0x3f]
  %vm140 = vcmask 48128
  %v142 = vsel %vm140, %v138, 0
  %vm144 = vcmask 1045504
  %v146 = vsel %vm144, %v139, 0
  %148 = vmatprep.subr.mxu0 0.0
  %149 = vmatpush1.msra.mxu0 %v146
  %150 = vmatprep.subr.mxu0 0.0
  %151 = vmatpush1.msra.mxu0 0.0
  %152 = vmatprep.subr.mxu0 0.0
  %153 = vmatpush1.msra.mxu0 0.0
  %154 = vmatprep.subr.mxu0 0.0
  %155 = vmatpush1.msra.mxu0 0.0
  %156 = vmatprep.subr.mxu0 0.0
  %157 = vmatpush1.msra.mxu0 0.0
  %158 = vmatprep.subr.mxu0 0.0
  %159 = vmatpush1.msra.mxu0 0.0
  %160 = vmatprep.subr.mxu0 0.0
  %161 = vmatpush1.msra.mxu0 0.0
  %162 = vmatprep.subr.mxu0 0.0
  %163 = vmatpush1.msra.mxu0 0.0
  %164 = vmatprep.subr.mxu0 0.0
  %165 = vmatpush1.msra.mxu0 0.0
  %166 = vmatprep.subr.mxu0 0.0
  %167 = vmatpush1.msra.mxu0 0.0
  %168 = vmatprep.subr.mxu0 0.0
  %169 = vmatpush1.msra.mxu0 0.0
  %170 = vmatprep.subr.mxu0 0.0
  %171 = vmatpush1.msra.mxu0 0.0
  %172 = vmatprep.subr.mxu0 0.0
  %173 = vmatpush1.msra.mxu0 0.0
  %174 = vmatprep.subr.mxu0 0.0
  %175 = vmatpush1.msra.mxu0 0.0
  %176 = vmatprep.subr.mxu0 0.0
  %177 = vmatpush1.msra.mxu0 0.0
  %178 = vmatprep.subr.mxu0 0.0
  %179 = vmatpush1.msra.mxu0 0.0
  %180 = vmatprep.subr.mxu0 0.0
  %181 = vmatpush1.msra.mxu0 0.0
  %182 = vmatprep.subr.mxu0 0.0
  %183 = vmatpush1.msra.mxu0 0.0
  %184 = vmatprep.subr.mxu0 0.0
  %185 = vmatpush1.msra.mxu0 0.0
  %186 = vmatprep.subr.mxu0 0.0
  %187 = vmatpush1.msra.mxu0 0.0
  %188 = vmatprep.subr.mxu0 0.0
  %189 = vmatpush1.msra.mxu0 0.0
  %190 = vmatprep.subr.mxu0 0.0
  %191 = vmatpush1.msra.mxu0 0.0
  %192 = vmatprep.subr.mxu0 0.0
  %193 = vmatpush1.msra.mxu0 0.0
  %194 = vmatprep.subr.mxu0 0.0
  %195 = vmatpush1.msra.mxu0 0.0
  %196 = vmatprep.subr.mxu0 0.0
  %197 = vmatpush1.msra.mxu0 0.0
  %198 = vmatprep.subr.mxu0 0.0
  %199 = vmatpush1.msra.mxu0 0.0
  %200 = vmatprep.subr.mxu0 0.0
  %201 = vmatpush1.msra.mxu0 0.0
  %202 = vmatprep.subr.mxu0 0.0
  %203 = vmatpush1.msra.mxu0 0.0
  %204 = vmatprep.subr.mxu0 0.0
  %205 = vmatpush1.msra.mxu0 0.0
  %206 = vmatprep.subr.mxu0 0.0
  %207 = vmatpush1.msra.mxu0 0.0
  %208 = vmatprep.subr.mxu0 0.0
  %209 = vmatpush1.msra.mxu0 0.0
  %210 = vmatprep.subr.mxu0 0.0
  %211 = vmatpush1.msra.mxu0 0.0
  %212 = vmatprep.mubr.f32.mxu0 0.0
  %213 = vmatmul.mubr.f32.gmra.mrb[0].mxu0 %v142
  %v214 = vpop.f32.mrb[0].mxu0
  %v215 = vadd.f32 0.0, %v214
  %v216 = vpop.f32.mrb[0].mxu0
  %217 = vdwg.mxu0
  %vm218 = vcmask 916480
  %v220 = vsel %vm218, %v121, 0
  %222 = vmatprep.subr.mxu0 0.0
  %223 = vmatpush1.msra.mxu0 %v124
  %224 = vmatprep.subr.mxu0 0.0
  %225 = vmatpush1.msra.mxu0 %v125
  %226 = vmatprep.subr.mxu0 0.0
  %227 = vmatpush1.msra.mxu0 %v126
  %228 = vmatprep.subr.mxu0 0.0
  %229 = vmatpush1.msra.mxu0 %v127
  %230 = vmatprep.subr.mxu0 0.0
  %231 = vmatpush1.msra.mxu0 %v128
  %232 = vmatprep.subr.mxu0 0.0
  %233 = vmatpush1.msra.mxu0 %v129
  %234 = vmatprep.subr.mxu0 0.0
  %235 = vmatpush1.msra.mxu0 %v130
  %236 = vmatprep.subr.mxu0 0.0
  %237 = vmatpush1.msra.mxu0 %v131
  %238 = vmatprep.subr.mxu0 0.0
  %239 = vmatpush1.msra.mxu0 %v132
  %240 = vmatprep.subr.mxu0 0.0
  %241 = vmatpush1.msra.mxu0 %v133
  %242 = vmatprep.subr.mxu0 0.0
  %243 = vmatpush1.msra.mxu0 %v134
  %244 = vmatprep.subr.mxu0 0.0
  %245 = vmatpush1.msra.mxu0 %v135
  %246 = vmatprep.subr.mxu0 0.0
  %247 = vmatpush1.msra.mxu0 %v136
  %248 = vmatprep.subr.mxu0 0.0
  %249 = vmatpush1.msra.mxu0 %v137
  %250 = vmatprep.subr.mxu0 0.0
  %251 = vmatpush1.msra.mxu0 0.0
  %252 = vmatprep.subr.mxu0 0.0
  %253 = vmatpush1.msra.mxu0 0.0
  %254 = vmatprep.subr.mxu0 0.0
  %255 = vmatpush1.msra.mxu0 0.0
  %256 = vmatprep.subr.mxu0 0.0
  %257 = vmatpush1.msra.mxu0 0.0
  %258 = vmatprep.subr.mxu0 0.0
  %259 = vmatpush1.msra.mxu0 0.0
  %260 = vmatprep.subr.mxu0 0.0
  %261 = vmatpush1.msra.mxu0 0.0
  %262 = vmatprep.subr.mxu0 0.0
  %263 = vmatpush1.msra.mxu0 0.0
  %264 = vmatprep.subr.mxu0 0.0
  %265 = vmatpush1.msra.mxu0 0.0
  %266 = vmatprep.subr.mxu0 0.0
  %267 = vmatpush1.msra.mxu0 0.0
  %268 = vmatprep.subr.mxu0 0.0
  %269 = vmatpush1.msra.mxu0 0.0
  %270 = vmatprep.subr.mxu0 0.0
  %271 = vmatpush1.msra.mxu0 0.0
  %272 = vmatprep.subr.mxu0 0.0
  %273 = vmatpush1.msra.mxu0 0.0
  %274 = vmatprep.subr.mxu0 0.0
  %275 = vmatpush1.msra.mxu0 0.0
  %276 = vmatprep.subr.mxu0 0.0
  %277 = vmatpush1.msra.mxu0 0.0
  %278 = vmatprep.subr.mxu0 0.0
  %279 = vmatpush1.msra.mxu0 0.0
  %280 = vmatprep.subr.mxu0 0.0
  %281 = vmatpush1.msra.mxu0 0.0
  %282 = vmatprep.subr.mxu0 0.0
  %283 = vmatpush1.msra.mxu0 0.0
  %284 = vmatprep.subr.mxu0 0.0
  %285 = vmatpush1.msra.mxu0 0.0
  %286 = vmatprep.mubr.f32.mxu0 0.0
  %287 = vmatmul.mubr.f32.gmra.mrb[0].mxu0 %v220
  %v288 = vpop.f32.mrb[0].mxu0
  %v289 = vadd.f32 %v215, %v288
  %v290 = vpop.f32.mrb[0].mxu0
  %291 = vdwg.mxu0
  %v292 = vld [vmem:[%s6] sm:$0x1]
  %v294 = vlaneseq
  %v295 = vshrl.u32 %v294, 7
  %v296 = vsub.s32 0, %v295
  %v297 = vrot.slane %v292, %v296
  %v299 = vadd.f32 %v289, %v297
  %v300 = vmax.f32 %v299, 0.0
  %v301 = vld [vmem:[%s7] sm:$0xff]
  %v302 = vld [vmem:[%s7 + $0x8] sm:$0xff]
  %v303 = vld [vmem:[%s7 + $0x10] sm:$0xff]
  %v304 = vld [vmem:[%s7 + $0x18] sm:$0xff]
  %v305 = vld [vmem:[#allocation2] sm:$0x1]
  %v307 = vlaneseq
  %v308 = vshrl.u32 %v307, 7
  %v309 = vsub.s32 0, %v308
  %v310 = vrot.slane %v305, %v309
  %vm312 = vcmask 261120
  %v314 = vsel %vm312, %v300, 0
  %316 = vmatprep.subr.mxu0 0.0
  %317 = vmatpush1.msra.mxu0 %v301
  %318 = vmatprep.subr.mxu0 0.0
  %319 = vmatpush1.msra.mxu0 %v302
  %320 = vmatprep.subr.mxu0 0.0
  %321 = vmatpush1.msra.mxu0 %v303
  %322 = vmatprep.subr.mxu0 0.0
  %323 = vmatpush1.msra.mxu0 %v304
  %324 = vmatprep.subr.mxu0 0.0
  %325 = vmatpush1.msra.mxu0 0.0
  %326 = vmatprep.subr.mxu0 0.0
  %327 = vmatpush1.msra.mxu0 0.0
  %328 = vmatprep.subr.mxu0 0.0
  %329 = vmatpush1.msra.mxu0 0.0
  %330 = vmatprep.subr.mxu0 0.0
  %331 = vmatpush1.msra.mxu0 0.0
  %332 = vmatprep.subr.mxu0 0.0
  %333 = vmatpush1.msra.mxu0 0.0
  %334 = vmatprep.subr.mxu0 0.0
  %335 = vmatpush1.msra.mxu0 0.0
  %336 = vmatprep.subr.mxu0 0.0
  %337 = vmatpush1.msra.mxu0 0.0
  %338 = vmatprep.subr.mxu0 0.0
  %339 = vmatpush1.msra.mxu0 0.0
  %340 = vmatprep.subr.mxu0 0.0
  %341 = vmatpush1.msra.mxu0 0.0
  %342 = vmatprep.subr.mxu0 0.0
  %343 = vmatpush1.msra.mxu0 0.0
  %344 = vmatprep.subr.mxu0 0.0
  %345 = vmatpush1.msra.mxu0 0.0
  %346 = vmatprep.subr.mxu0 0.0
  %347 = vmatpush1.msra.mxu0 0.0
  %348 = vmatprep.subr.mxu0 0.0
  %349 = vmatpush1.msra.mxu0 0.0
  %350 = vmatprep.subr.mxu0 0.0
  %351 = vmatpush1.msra.mxu0 0.0
  %352 = vmatprep.subr.mxu0 0.0
  %353 = vmatpush1.msra.mxu0 0.0
  %354 = vmatprep.subr.mxu0 0.0
  %355 = vmatpush1.msra.mxu0 0.0
  %356 = vmatprep.subr.mxu0 0.0
  %357 = vmatpush1.msra.mxu0 0.0
  %358 = vmatprep.subr.mxu0 0.0
  %359 = vmatpush1.msra.mxu0 0.0
  %360 = vmatprep.subr.mxu0 0.0
  %361 = vmatpush1.msra.mxu0 0.0
  %362 = vmatprep.subr.mxu0 0.0
  %363 = vmatpush1.msra.mxu0 0.0
  %364 = vmatprep.subr.mxu0 0.0
  %365 = vmatpush1.msra.mxu0 0.0
  %366 = vmatprep.subr.mxu0 0.0
  %367 = vmatpush1.msra.mxu0 0.0
  %368 = vmatprep.subr.mxu0 0.0
  %369 = vmatpush1.msra.mxu0 0.0
  %370 = vmatprep.subr.mxu0 0.0
  %371 = vmatpush1.msra.mxu0 0.0
  %372 = vmatprep.subr.mxu0 0.0
  %373 = vmatpush1.msra.mxu0 0.0
  %374 = vmatprep.subr.mxu0 0.0
  %375 = vmatpush1.msra.mxu0 0.0
  %376 = vmatprep.subr.mxu0 0.0
  %377 = vmatpush1.msra.mxu0 0.0
  %378 = vmatprep.subr.mxu0 0.0
  %379 = vmatpush1.msra.mxu0 0.0
  %380 = vmatprep.mubr.f32.mxu0 0.0
  %381 = vmatmul.mubr.f32.gmra.mrb[0].mxu0 %v314
  %v382 = vpop.f32.mrb[0].mxu0
  %v383 = vadd.f32 %v310, %v382
  %v384 = vpop.f32.mrb[0].mxu0
  %385 = vdwg.mxu0
  %vm386 = vcmask 1024
  %387 = vst.msk [vmem:[%s9] sm:$0x3] %vm386, %v383
  // Predicated region
  $region38: #{cnn_forward.1} parent=0 // pred_check
    _
  $region39: #{cnn_forward.1} parent=0 // pred_check_branch
    %389 = sbr.rel (0) target = $region41
  $region40: #{cnn_forward.1} parent=0 // pred_region
    _
  $region41: #{cnn_forward.1} parent=0 // pred_fallthru
    _
  // Predicated region
  $region42: #{cnn_forward.1} parent=0 // pred_check
    _
  $region43: #{cnn_forward.1} parent=0 // pred_check_branch
    %391 = sbr.rel (0) target = $region45
  $region44: #{cnn_forward.1} parent=0 // pred_region
    _
  $region45: #{cnn_forward.1} parent=0 // pred_fallthru
    _

</llo_original>
